<compile_context>
chip_gen: v5e
topology: v5e:2x2
jax: 0.10.0
libtpu: 0.0.40
codegen_flags: <defaults>
</compile_context>

<pallas_src>
import jax
import jax.numpy as jnp
import numpy as np
from jax import lax
from jax.experimental import pallas as pl
from jax.experimental.pallas import tpu as pltpu


def attention_kernel(gamma_ref,
                     wq_ref, bq_ref, wk_ref, bk_ref, wv_ref, bv_ref,
                     q_ref, k_ref, v_ref, o_ref):
    """Processes a (block_b, C, L) block of batch elements in one grid step."""
    gamma = gamma_ref[0]                       # scalar (SMEM)
    wq = wq_ref[...]; bq = bq_ref[...]         # (C2p, C), (C2p, 1)
    wk = wk_ref[...]; bk = bk_ref[...]
    wv = wv_ref[...]; bv = bv_ref[...]         # (C,   C), (C,   1)

    block_b = q_ref.shape[0]
    # Static unroll over the batch block: amortizes grid-step overhead while
    # keeping every matmul a plain 2-D MXU op (no batched-dot layout shuffles).
    for b in range(block_b):
        q_b = q_ref[b]                         # (C, L)
        k_b = k_ref[b]
        v_b = v_ref[b]

        # 1x1 Conv1d projections == channel matmuls; accumulate in f32.
        pq = jnp.dot(wq, q_b, preferred_element_type=jnp.float32) + bq   # (C2p, L)
        pk = jnp.dot(wk, k_b, preferred_element_type=jnp.float32) + bk   # (C2p, L)
        pv = jnp.dot(wv, v_b, preferred_element_type=jnp.float32) + bv   # (C,   L)

        # energy[q, k] = sum_c pq[c, q] * pk[c, k] — contract the channel dim
        # directly (MXU handles the transposed-LHS form), no transpose copy.
        energy = lax.dot_general(pq, pk, (((0,), (0,)), ((), ())),
                                 preferred_element_type=jnp.float32)      # (L, L)

        # Numerically-stable softmax over the key axis; divide via EUP recip.
        energy = energy - jnp.max(energy, axis=-1, keepdims=True)
        p = jnp.exp(energy)
        attn = p * pl.reciprocal(jnp.sum(p, axis=-1, keepdims=True), approx=True)

        # out[c, q] = sum_k pv[c, k] * attn[q, k] — contract the key dim of
        # both operands, avoiding attn.T.
        out = lax.dot_general(pv, attn, (((1,), (1,)), ((), ())),
                              preferred_element_type=jnp.float32)         # (C, L)

        # Residual add in f32, single cast at the lane-dense store.
        o_ref[b] = (gamma * out + v_b.astype(jnp.float32)).astype(o_ref.dtype)


def attention_module(Q, K, V, params, *, block_b=None):
    B, C, L = Q.shape
    C2 = C // 2

    if block_b is None:
        # Whole batch per step when B is tiny (the kernel is step-overhead
        # bound); otherwise split so both TensorCores on v7x get work.
        block_b = B if B <= 4 else pl.cdiv(B, 2)
    block_b = min(block_b, B)
    if B % block_b != 0:          # keep every block full (no ragged last step)
        block_b = 1
    num_blocks = B // block_b

    # Zero-pad the C//2 projections up to a multiple of 8 output channels so
    # pq/pk tiles fill whole sublanes. Zero weight/bias rows give zero pq/pk
    # rows, which contribute exactly nothing to the energy contraction.
    C2p = max(8, ((C2 + 7) // 8) * 8)
    pad = C2p - C2
    if pad:
        wq = jnp.pad(params["wq"], ((0, pad), (0, 0)))
        bq = jnp.pad(params["bq"], ((0, pad), (0, 0)))
        wk = jnp.pad(params["wk"], ((0, pad), (0, 0)))
        bk = jnp.pad(params["bk"], ((0, pad), (0, 0)))
    else:
        wq, bq, wk, bk = params["wq"], params["bq"], params["wk"], params["bk"]
    wv, bv = params["wv"], params["bv"]

    def weight_spec(shape):
        # Constant index_map -> weights fetched once, resident across the grid.
        return pl.BlockSpec(shape, lambda b: (0, 0))

    qkv_spec = pl.BlockSpec((block_b, C, L), lambda b: (b, 0, 0))

    # Advisory cost hint (helps XLA schedule this small custom call).
    flops = 2 * B * (2 * C2p * C * L + C * C * L + C2p * L * L + C * L * L)
    itemsize = jnp.dtype(Q.dtype).itemsize
    bytes_accessed = (4 * B * C * L * itemsize
                      + 4 * (2 * C2p * (C + 1) + C * (C + 1) + 1))
    cost = pl.CostEstimate(flops=flops,
                           transcendentals=B * L * L,
                           bytes_accessed=bytes_accessed)

    return pl.pallas_call(
        attention_kernel,
        out_shape=jax.ShapeDtypeStruct((B, C, L), V.dtype),
        grid=(num_blocks,),
        in_specs=[
            pl.BlockSpec(memory_space=pltpu.SMEM),         # gamma (scalar)
            weight_spec((C2p, C)), weight_spec((C2p, 1)),  # query_conv  W, b (padded)
            weight_spec((C2p, C)), weight_spec((C2p, 1)),  # key_conv    W, b (padded)
            weight_spec((C,   C)), weight_spec((C,   1)),  # value_conv  W, b
            qkv_spec, qkv_spec, qkv_spec,                  # Q, K, V
        ],
        out_specs=pl.BlockSpec((block_b, C, L), lambda b: (b, 0, 0)),
        compiler_params=pltpu.CompilerParams(dimension_semantics=("parallel",)),
        cost_estimate=cost,
    )(params["gamma"], wq, bq, wk, bk, wv, bv, Q, K, V)


def attention_reference(Q, K, V, params):
    """Pure-JAX reference matching the PyTorch forward exactly."""
    pq = jnp.einsum("oc,bcl->bol", params["wq"], Q) + params["bq"][None]   # (B, C//2, L)
    pk = jnp.einsum("oc,bcl->bol", params["wk"], K) + params["bk"][None]   # (B, C//2, L)
    pv = jnp.einsum("oc,bcl->bol", params["wv"], V) + params["bv"][None]   # (B, C,    L)
    energy = jnp.einsum("bcq,bck->bqk", pq, pk)                            # (B, L, L)
    attn = jax.nn.softmax(energy, axis=-1)
    out = jnp.einsum("bck,bqk->bcq", pv, attn)                             # (B, C, L)
    return params["gamma"][0] * out + V


if __name__ == "__main__":
    B, C, L = 2, 8, 128
    C2 = C // 2

    key = jax.random.PRNGKey(0)
    ks = jax.random.split(key, 9)
    Q = jax.random.normal(ks[0], (B, C, L), jnp.float32)
    K = jax.random.normal(ks[1], (B, C, L), jnp.float32)
    V = jax.random.normal(ks[2], (B, C, L), jnp.float32)

    params = {
        "wq": 0.1 * jax.random.normal(ks[3], (C2, C), jnp.float32),
        "bq": 0.1 * jax.random.normal(ks[4], (C2, 1), jnp.float32),
        "wk": 0.1 * jax.random.normal(ks[5], (C2, C), jnp.float32),
        "bk": 0.1 * jax.random.normal(ks[6], (C2, 1), jnp.float32),
        "wv": 0.1 * jax.random.normal(ks[7], (C, C), jnp.float32),
        "bv": 0.1 * jax.random.normal(ks[8], (C, 1), jnp.float32),
        # PyTorch initializes gamma = 0 (output would trivially equal V);
        # use a non-zero deterministic value so the attention path is exercised.
        "gamma": jnp.array([0.5], jnp.float32),
    }

    out = attention_module(Q, K, V, params)
    jax.block_until_ready(out)

    ref = attention_reference(Q, K, V, params)
    # Tolerance accounts for the approximate EUP reciprocal in the softmax.
    np.testing.assert_allclose(np.asarray(out), np.asarray(ref), rtol=2e-3, atol=2e-3)
    print("KERNEL_OK")
</pallas_src>

<mosaic_0001>
module attributes {stable_mosaic.version = 11 : i64} {
  func.func @attention_kernel(%arg0: i32, %arg1: memref<1xf32, #tpu.memory_space<smem>>, %arg2: memref<8x8xf32, #tpu.memory_space<vmem>>, %arg3: memref<8x1xf32, #tpu.memory_space<vmem>>, %arg4: memref<8x8xf32, #tpu.memory_space<vmem>>, %arg5: memref<8x1xf32, #tpu.memory_space<vmem>>, %arg6: memref<8x8xf32, #tpu.memory_space<vmem>>, %arg7: memref<8x1xf32, #tpu.memory_space<vmem>>, %arg8: memref<2x8x128xf32, #tpu.memory_space<vmem>>, %arg9: memref<2x8x128xf32, #tpu.memory_space<vmem>>, %arg10: memref<2x8x128xf32, #tpu.memory_space<vmem>>, %arg11: memref<2x8x128xf32, #tpu.memory_space<vmem>>) attributes {dimension_semantics = [#tpu.dimension_semantics<parallel>], iteration_bounds = array<i64: 1>, scalar_prefetch = 0 : i64, scratch_operands = 0 : i64, tpu.core_type = #tpu.core_type<tc>, window_params = [{transform_indices = @transform_0, window_bounds = array<i64: 1>}, {pipeline_mode = #tpu.pipeline_mode<synchronous>, transform_indices = @transform_1, window_bounds = array<i64: 8, 8>}, {pipeline_mode = #tpu.pipeline_mode<synchronous>, transform_indices = @transform_2, window_bounds = array<i64: 8, 1>}, {pipeline_mode = #tpu.pipeline_mode<synchronous>, transform_indices = @transform_3, window_bounds = array<i64: 8, 8>}, {pipeline_mode = #tpu.pipeline_mode<synchronous>, transform_indices = @transform_4, window_bounds = array<i64: 8, 1>}, {pipeline_mode = #tpu.pipeline_mode<synchronous>, transform_indices = @transform_5, window_bounds = array<i64: 8, 8>}, {pipeline_mode = #tpu.pipeline_mode<synchronous>, transform_indices = @transform_6, window_bounds = array<i64: 8, 1>}, {transform_indices = @transform_7, window_bounds = array<i64: 2, 8, 128>}, {transform_indices = @transform_8, window_bounds = array<i64: 2, 8, 128>}, {transform_indices = @transform_9, window_bounds = array<i64: 2, 8, 128>}, {transform_indices = @transform_10, window_bounds = array<i64: 2, 8, 128>}]} {
    %c0 = arith.constant 0 : index
    %0 = memref.load %arg1[%c0] : memref<1xf32, #tpu.memory_space<smem>>
    %c0_0 = arith.constant 0 : index
    %c0_1 = arith.constant 0 : index
    %1 = vector.load %arg2[%c0_0, %c0_1] : memref<8x8xf32, #tpu.memory_space<vmem>>, vector<8x8xf32>
    %c0_2 = arith.constant 0 : index
    %c0_3 = arith.constant 0 : index
    %2 = vector.load %arg3[%c0_2, %c0_3] : memref<8x1xf32, #tpu.memory_space<vmem>>, vector<8x1xf32>
    %c0_4 = arith.constant 0 : index
    %c0_5 = arith.constant 0 : index
    %3 = vector.load %arg4[%c0_4, %c0_5] : memref<8x8xf32, #tpu.memory_space<vmem>>, vector<8x8xf32>
    %c0_6 = arith.constant 0 : index
    %c0_7 = arith.constant 0 : index
    %4 = vector.load %arg5[%c0_6, %c0_7] : memref<8x1xf32, #tpu.memory_space<vmem>>, vector<8x1xf32>
    %c0_8 = arith.constant 0 : index
    %c0_9 = arith.constant 0 : index
    %5 = vector.load %arg6[%c0_8, %c0_9] : memref<8x8xf32, #tpu.memory_space<vmem>>, vector<8x8xf32>
    %c0_10 = arith.constant 0 : index
    %c0_11 = arith.constant 0 : index
    %6 = vector.load %arg7[%c0_10, %c0_11] : memref<8x1xf32, #tpu.memory_space<vmem>>, vector<8x1xf32>
    %c0_12 = arith.constant 0 : index
    %c0_13 = arith.constant 0 : index
    %c0_14 = arith.constant 0 : index
    %7 = vector.load %arg8[%c0_12, %c0_13, %c0_14] : memref<2x8x128xf32, #tpu.memory_space<vmem>>, vector<1x8x128xf32>
    %8 = vector.shape_cast %7 : vector<1x8x128xf32> to vector<8x128xf32>
    %c0_15 = arith.constant 0 : index
    %c0_16 = arith.constant 0 : index
    %c0_17 = arith.constant 0 : index
    %9 = vector.load %arg9[%c0_15, %c0_16, %c0_17] : memref<2x8x128xf32, #tpu.memory_space<vmem>>, vector<1x8x128xf32>
    %10 = vector.shape_cast %9 : vector<1x8x128xf32> to vector<8x128xf32>
    %c0_18 = arith.constant 0 : index
    %c0_19 = arith.constant 0 : index
    %c0_20 = arith.constant 0 : index
    %11 = vector.load %arg10[%c0_18, %c0_19, %c0_20] : memref<2x8x128xf32, #tpu.memory_space<vmem>>, vector<1x8x128xf32>
    %12 = vector.shape_cast %11 : vector<1x8x128xf32> to vector<8x128xf32>
    %cst = arith.constant dense<0.000000e+00> : vector<8x128xf32>
    %13 = tpu.matmul %1, %8, %cst {dimension_numbers = #tpu.dot_dimension_numbers<[1], [0], [0], [1], [0, 0, 1, 1], [], []>} : vector<8x8xf32>, vector<8x128xf32>, vector<8x128xf32> -> vector<8x128xf32>
    %14 = vector.broadcast %2 : vector<8x1xf32> to vector<8x128xf32>
    %15 = arith.addf %13, %14 : vector<8x128xf32>
    %cst_21 = arith.constant dense<0.000000e+00> : vector<8x128xf32>
    %16 = tpu.matmul %3, %10, %cst_21 {dimension_numbers = #tpu.dot_dimension_numbers<[1], [0], [0], [1], [0, 0, 1, 1], [], []>} : vector<8x8xf32>, vector<8x128xf32>, vector<8x128xf32> -> vector<8x128xf32>
    %17 = vector.broadcast %4 : vector<8x1xf32> to vector<8x128xf32>
    %18 = arith.addf %16, %17 : vector<8x128xf32>
    %cst_22 = arith.constant dense<0.000000e+00> : vector<8x128xf32>
    %19 = tpu.matmul %5, %12, %cst_22 {dimension_numbers = #tpu.dot_dimension_numbers<[1], [0], [0], [1], [0, 0, 1, 1], [], []>} : vector<8x8xf32>, vector<8x128xf32>, vector<8x128xf32> -> vector<8x128xf32>
    %20 = vector.broadcast %6 : vector<8x1xf32> to vector<8x128xf32>
    %21 = arith.addf %19, %20 : vector<8x128xf32>
    %cst_23 = arith.constant dense<0.000000e+00> : vector<128x128xf32>
    %22 = tpu.matmul %15, %18, %cst_23 {dimension_numbers = #tpu.dot_dimension_numbers<[0], [0], [1], [1], [0, 1, 1, 1], [], []>} : vector<8x128xf32>, vector<8x128xf32>, vector<128x128xf32> -> vector<128x128xf32>
    %cst_24 = arith.constant dense<0xFF800000> : vector<128xf32>
    %23 = vector.multi_reduction <maximumf>, %22, %cst_24 [1] : vector<128x128xf32> to vector<128xf32>
    %24 = vector.shape_cast %23 : vector<128xf32> to vector<128x1xf32>
    %25 = vector.broadcast %24 : vector<128x1xf32> to vector<128x128xf32>
    %26 = arith.subf %22, %25 : vector<128x128xf32>
    %27 = math.exp %26 : vector<128x128xf32>
    %cst_25 = arith.constant dense<0.000000e+00> : vector<128xf32>
    %28 = vector.multi_reduction <add>, %27, %cst_25 [1] : vector<128x128xf32> to vector<128xf32>
    %29 = vector.shape_cast %28 : vector<128xf32> to vector<128x1xf32>
    %30 = tpu.reciprocal %29 {approx = true} : vector<128x1xf32> -> vector<128x1xf32>
    %31 = vector.broadcast %30 : vector<128x1xf32> to vector<128x128xf32>
    %32 = arith.mulf %27, %31 : vector<128x128xf32>
    %cst_26 = arith.constant dense<0.000000e+00> : vector<8x128xf32>
    %33 = tpu.matmul %21, %32, %cst_26 {dimension_numbers = #tpu.dot_dimension_numbers<[1], [1], [0], [0], [0, 0, 1, 0], [], []>} : vector<8x128xf32>, vector<128x128xf32>, vector<8x128xf32> -> vector<8x128xf32>
    %34 = vector.broadcast %0 : f32 to vector<8x128xf32>
    %35 = arith.mulf %34, %33 : vector<8x128xf32>
    %36 = arith.addf %35, %12 : vector<8x128xf32>
    %c0_27 = arith.constant 0 : index
    %c0_28 = arith.constant 0 : index
    %c0_29 = arith.constant 0 : index
    %37 = vector.load %arg11[%c0_27, %c0_28, %c0_29] : memref<2x8x128xf32, #tpu.memory_space<vmem>>, vector<1x8x128xf32>
    %38 = vector.shape_cast %37 : vector<1x8x128xf32> to vector<8x128xf32>
    %39 = vector.shape_cast %36 : vector<8x128xf32> to vector<1x8x128xf32>
    tpu.vector_store %arg11[%c0_27, %c0_28, %c0_29], %39 {strides = array<i32>} : memref<2x8x128xf32, #tpu.memory_space<vmem>>, vector<1x8x128xf32>,
    %c1 = arith.constant 1 : index
    %c0_30 = arith.constant 0 : index
    %c0_31 = arith.constant 0 : index
    %40 = vector.load %arg8[%c1, %c0_30, %c0_31] : memref<2x8x128xf32, #tpu.memory_space<vmem>>, vector<1x8x128xf32>
    %41 = vector.shape_cast %40 : vector<1x8x128xf32> to vector<8x128xf32>
    %c1_32 = arith.constant 1 : index
    %c0_33 = arith.constant 0 : index
    %c0_34 = arith.constant 0 : index
    %42 = vector.load %arg9[%c1_32, %c0_33, %c0_34] : memref<2x8x128xf32, #tpu.memory_space<vmem>>, vector<1x8x128xf32>
    %43 = vector.shape_cast %42 : vector<1x8x128xf32> to vector<8x128xf32>
    %c1_35 = arith.constant 1 : index
    %c0_36 = arith.constant 0 : index
    %c0_37 = arith.constant 0 : index
    %44 = vector.load %arg10[%c1_35, %c0_36, %c0_37] : memref<2x8x128xf32, #tpu.memory_space<vmem>>, vector<1x8x128xf32>
    %45 = vector.shape_cast %44 : vector<1x8x128xf32> to vector<8x128xf32>
    %cst_38 = arith.constant dense<0.000000e+00> : vector<8x128xf32>
    %46 = tpu.matmul %1, %41, %cst_38 {dimension_numbers = #tpu.dot_dimension_numbers<[1], [0], [0], [1], [0, 0, 1, 1], [], []>} : vector<8x8xf32>, vector<8x128xf32>, vector<8x128xf32> -> vector<8x128xf32>
    %47 = vector.broadcast %2 : vector<8x1xf32> to vector<8x128xf32>
    %48 = arith.addf %46, %47 : vector<8x128xf32>
    %cst_39 = arith.constant dense<0.000000e+00> : vector<8x128xf32>
    %49 = tpu.matmul %3, %43, %cst_39 {dimension_numbers = #tpu.dot_dimension_numbers<[1], [0], [0], [1], [0, 0, 1, 1], [], []>} : vector<8x8xf32>, vector<8x128xf32>, vector<8x128xf32> -> vector<8x128xf32>
    %50 = vector.broadcast %4 : vector<8x1xf32> to vector<8x128xf32>
    %51 = arith.addf %49, %50 : vector<8x128xf32>
    %cst_40 = arith.constant dense<0.000000e+00> : vector<8x128xf32>
    %52 = tpu.matmul %5, %45, %cst_40 {dimension_numbers = #tpu.dot_dimension_numbers<[1], [0], [0], [1], [0, 0, 1, 1], [], []>} : vector<8x8xf32>, vector<8x128xf32>, vector<8x128xf32> -> vector<8x128xf32>
    %53 = vector.broadcast %6 : vector<8x1xf32> to vector<8x128xf32>
    %54 = arith.addf %52, %53 : vector<8x128xf32>
    %cst_41 = arith.constant dense<0.000000e+00> : vector<128x128xf32>
    %55 = tpu.matmul %48, %51, %cst_41 {dimension_numbers = #tpu.dot_dimension_numbers<[0], [0], [1], [1], [0, 1, 1, 1], [], []>} : vector<8x128xf32>, vector<8x128xf32>, vector<128x128xf32> -> vector<128x128xf32>
    %cst_42 = arith.constant dense<0xFF800000> : vector<128xf32>
    %56 = vector.multi_reduction <maximumf>, %55, %cst_42 [1] : vector<128x128xf32> to vector<128xf32>
    %57 = vector.shape_cast %56 : vector<128xf32> to vector<128x1xf32>
    %58 = vector.broadcast %57 : vector<128x1xf32> to vector<128x128xf32>
    %59 = arith.subf %55, %58 : vector<128x128xf32>
    %60 = math.exp %59 : vector<128x128xf32>
    %cst_43 = arith.constant dense<0.000000e+00> : vector<128xf32>
    %61 = vector.multi_reduction <add>, %60, %cst_43 [1] : vector<128x128xf32> to vector<128xf32>
    %62 = vector.shape_cast %61 : vector<128xf32> to vector<128x1xf32>
    %63 = tpu.reciprocal %62 {approx = true} : vector<128x1xf32> -> vector<128x1xf32>
    %64 = vector.broadcast %63 : vector<128x1xf32> to vector<128x128xf32>
    %65 = arith.mulf %60, %64 : vector<128x128xf32>
    %cst_44 = arith.constant dense<0.000000e+00> : vector<8x128xf32>
    %66 = tpu.matmul %54, %65, %cst_44 {dimension_numbers = #tpu.dot_dimension_numbers<[1], [1], [0], [0], [0, 0, 1, 0], [], []>} : vector<8x128xf32>, vector<128x128xf32>, vector<8x128xf32> -> vector<8x128xf32>
    %67 = vector.broadcast %0 : f32 to vector<8x128xf32>
    %68 = arith.mulf %67, %66 : vector<8x128xf32>
    %69 = arith.addf %68, %45 : vector<8x128xf32>
    %c1_45 = arith.constant 1 : index
    %c0_46 = arith.constant 0 : index
    %c0_47 = arith.constant 0 : index
    %70 = vector.load %arg11[%c1_45, %c0_46, %c0_47] : memref<2x8x128xf32, #tpu.memory_space<vmem>>, vector<1x8x128xf32>
    %71 = vector.shape_cast %70 : vector<1x8x128xf32> to vector<8x128xf32>
    %72 = vector.shape_cast %69 : vector<8x128xf32> to vector<1x8x128xf32>
    tpu.vector_store %arg11[%c1_45, %c0_46, %c0_47], %72 {strides = array<i32>} : memref<2x8x128xf32, #tpu.memory_space<vmem>>, vector<1x8x128xf32>,
    return
  }
  func.func @transform_0(%arg0: i32) -> i32 {
    %c0_i32 = arith.constant 0 : i32
    %c0_i32_0 = arith.constant 0 : i32
    return %c0_i32 : i32
  }
  func.func @transform_1(%arg0: i32) -> (i32, i32) {
    %c0_i32 = arith.constant 0 : i32
    %c0_i32_0 = arith.constant 0 : i32
    %c0_i32_1 = arith.constant 0 : i32
    return %c0_i32, %c0_i32_0 : i32, i32
  }
  func.func @transform_2(%arg0: i32) -> (i32, i32) {
    %c0_i32 = arith.constant 0 : i32
    %c0_i32_0 = arith.constant 0 : i32
    %c0_i32_1 = arith.constant 0 : i32
    return %c0_i32, %c0_i32_0 : i32, i32
  }
  func.func @transform_3(%arg0: i32) -> (i32, i32) {
    %c0_i32 = arith.constant 0 : i32
    %c0_i32_0 = arith.constant 0 : i32
    %c0_i32_1 = arith.constant 0 : i32
    return %c0_i32, %c0_i32_0 : i32, i32
  }
  func.func @transform_4(%arg0: i32) -> (i32, i32) {
    %c0_i32 = arith.constant 0 : i32
    %c0_i32_0 = arith.constant 0 : i32
    %c0_i32_1 = arith.constant 0 : i32
    return %c0_i32, %c0_i32_0 : i32, i32
  }
  func.func @transform_5(%arg0: i32) -> (i32, i32) {
    %c0_i32 = arith.constant 0 : i32
    %c0_i32_0 = arith.constant 0 : i32
    %c0_i32_1 = arith.constant 0 : i32
    return %c0_i32, %c0_i32_0 : i32, i32
  }
  func.func @transform_6(%arg0: i32) -> (i32, i32) {
    %c0_i32 = arith.constant 0 : i32
    %c0_i32_0 = arith.constant 0 : i32
    %c0_i32_1 = arith.constant 0 : i32
    return %c0_i32, %c0_i32_0 : i32, i32
  }
  func.func @transform_7(%arg0: i32) -> (i32, i32, i32) {
    %c0_i32 = arith.constant 0 : i32
    %c0_i32_0 = arith.constant 0 : i32
    %c0_i32_1 = arith.constant 0 : i32
    return %arg0, %c0_i32, %c0_i32_0 : i32, i32, i32
  }
  func.func @transform_8(%arg0: i32) -> (i32, i32, i32) {
    %c0_i32 = arith.constant 0 : i32
    %c0_i32_0 = arith.constant 0 : i32
    %c0_i32_1 = arith.constant 0 : i32
    return %arg0, %c0_i32, %c0_i32_0 : i32, i32, i32
  }
  func.func @transform_9(%arg0: i32) -> (i32, i32, i32) {
    %c0_i32 = arith.constant 0 : i32
    %c0_i32_0 = arith.constant 0 : i32
    %c0_i32_1 = arith.constant 0 : i32
    return %arg0, %c0_i32, %c0_i32_0 : i32, i32, i32
  }
  func.func @transform_10(%arg0: i32) -> (i32, i32, i32) {
    %c0_i32 = arith.constant 0 : i32
    %c0_i32_0 = arith.constant 0 : i32
    %c0_i32_1 = arith.constant 0 : i32
    return %arg0, %c0_i32, %c0_i32_0 : i32, i32, i32
  }
}

</mosaic_0001>

<llo_original>
// kernel: tpu_custom_call.1
$region0: #{tpu_custom_call.1}
  #allocation0 [shape = 'u32[]', space=smem, size = 0x4, offset = 0x4, fixed_abs, tag = 'smem constant byte address 0x4 - core index']
  #allocation1 [shape = 'u32[72,128]{1,0:T(1,128)}', space=vmem, size = 0x9000, scoped, tag = 'internal scratch']
  #allocation2 [shape = 'f32[1]{0:T(128)S(6)}', space=smem, size = 0x200, scoped, tag = 'scoped memory for tpu_custom_call.1']
  %s0 = inlined_call_operand.<no memory space> [shape: f32[1], index: 0, kind: input, shape index: {}]
  %s1 = inlined_call_operand.hbm [shape: f32[8,8], index: 1, kind: input, shape index: {}]
  %s2 = inlined_call_operand.vmem [shape: f32[8,1], index: 2, kind: input, shape index: {}]
  %s3 = inlined_call_operand.hbm [shape: f32[8,8], index: 3, kind: input, shape index: {}]
  %s4 = inlined_call_operand.vmem [shape: f32[8,1], index: 4, kind: input, shape index: {}]
  %s5 = inlined_call_operand.hbm [shape: f32[8,8], index: 5, kind: input, shape index: {}]
  %s6 = inlined_call_operand.vmem [shape: f32[8,1], index: 6, kind: input, shape index: {}]
  %s7 = inlined_call_operand.vmem [shape: f32[2,8,128], index: 7, kind: input, shape index: {}]
  %s8 = inlined_call_operand.vmem [shape: f32[2,8,128], index: 8, kind: input, shape index: {}]
  %s9 = inlined_call_operand.hbm [shape: f32[2,8,128], index: 9, kind: input, shape index: {}]
  %s10 = inlined_call_operand.hbm [shape: f32[2,8,128], index: 10, kind: output, shape index: {}]
  %s11 = sld [smem:[#allocation0]]
  $region66: #{tpu_custom_call.1} parent=0
    _
  %s13 = ssub.s32 1, %s11
  %s14 = scalar_select 0, %s13, %s11
  %15 = sst [smem:[#allocation2]] %s0
  $region1: #{tpu_custom_call.1} parent=0
    #allocation3 [shape = 'u8[4096]{0}', space=vmem, size = 0x1000, scoped, tag = 'input window, operand 1, single buffered']
    #allocation4 [shape = 's32[1]{0}', space=sflag, size = 0x4, scoped, tag = 'scoped memory for tpu_custom_call.1']
    #allocation5 [shape = 's32[1]{0}', space=sflag, size = 0x4, scoped, tag = 'scoped memory for tpu_custom_call.1']
    #allocation6 [shape = 'u8[4096]{0}', space=vmem, size = 0x1000, scoped, tag = 'input window, operand 3, single buffered']
    #allocation7 [shape = 's32[1]{0}', space=sflag, size = 0x4, scoped, tag = 'scoped memory for tpu_custom_call.1']
    #allocation8 [shape = 'u8[4096]{0}', space=vmem, size = 0x1000, scoped, tag = 'input window, operand 5, single buffered']
    #allocation9 [shape = 'u8[8192]{0}', space=vmem, size = 0x2000, scoped, tag = 'input window, operand 9, single buffered']
    #allocation10 [shape = 's32[1]{0}', space=sflag, size = 0x4, scoped, tag = 'scoped memory for tpu_custom_call.1']
    #allocation11 [shape = 'u8[8192]{0}', space=vmem, size = 0x2000, scoped, tag = 'output window, operand 0, single buffered']
    %16 = vsyncpa [#allocation4], 0
    %17 = vsyncpa [#allocation7], 0
    %18 = vsyncpa [#allocation10], 0
    %19 = vsyncpa [#allocation5], 0
    // Predicated region
    $region2: #{tpu_custom_call.1} parent=1 // pred_check
      _
    $region3: #{tpu_custom_call.1} parent=1 // pred_check_branch
      %21 = sbr.rel (0) target = $region5
    $region4: #{tpu_custom_call.1} parent=1 // pred_region
      _
    $region5: #{tpu_custom_call.1} parent=1 // pred_fallthru
      _
    // Predicated region
    $region6: #{tpu_custom_call.1} parent=1 // pred_check
      _
    $region7: #{tpu_custom_call.1} parent=1 // pred_check_branch
      %23 = sbr.rel (0) target = $region9
    $region8: #{tpu_custom_call.1} parent=1 // pred_region
      %25 = vsyncadd [#allocation4], 0
      %s27 = sshll.u32 %s1, 4
      %s28 = int_to_ptr.hbm [resolvable:$true] %s27
      %s29 = sshll.u32 [#allocation3], 4
      %s30 = int_to_ptr.vmem [resolvable:$true] %s29
      %32 = dma.hbm_to_vmem [thread:$0]  %s28, 128, %s30, [#allocation4]
    $region9: #{tpu_custom_call.1} parent=1 // pred_fallthru
      _
    // Predicated region
    $region10: #{tpu_custom_call.1} parent=1 // pred_check
      _
    $region11: #{tpu_custom_call.1} parent=1 // pred_check_branch
      %34 = sbr.rel (0) target = $region13
    $region12: #{tpu_custom_call.1} parent=1 // pred_region
      _
    $region13: #{tpu_custom_call.1} parent=1 // pred_fallthru
      _
    // Predicated region
    $region14: #{tpu_custom_call.1} parent=1 // pred_check
      _
    $region15: #{tpu_custom_call.1} parent=1 // pred_check_branch
      %36 = sbr.rel (0) target = $region17
    $region16: #{tpu_custom_call.1} parent=1 // pred_region
      %38 = vsyncadd [#allocation7], 0
      %s40 = sshll.u32 %s3, 4
      %s41 = int_to_ptr.hbm [resolvable:$true] %s40
      %s42 = sshll.u32 [#allocation6], 4
      %s43 = int_to_ptr.vmem [resolvable:$true] %s42
      %45 = dma.hbm_to_vmem [thread:$0]  %s41, 128, %s43, [#allocation7]
    $region17: #{tpu_custom_call.1} parent=1 // pred_fallthru
      _
    // Predicated region
    $region18: #{tpu_custom_call.1} parent=1 // pred_check
      _
    $region19: #{tpu_custom_call.1} parent=1 // pred_check_branch
      %47 = sbr.rel (0) target = $region21
    $region20: #{tpu_custom_call.1} parent=1 // pred_region
      _
    $region21: #{tpu_custom_call.1} parent=1 // pred_fallthru
      _
    // Predicated region
    $region22: #{tpu_custom_call.1} parent=1 // pred_check
      _
    $region23: #{tpu_custom_call.1} parent=1 // pred_check_branch
      %49 = sbr.rel (0) target = $region25
    $region24: #{tpu_custom_call.1} parent=1 // pred_region
      %51 = vsyncadd [#allocation7], 0
      %s53 = sshll.u32 %s5, 4
      %s54 = int_to_ptr.hbm [resolvable:$true] %s53
      %s55 = sshll.u32 [#allocation8], 4
      %s56 = int_to_ptr.vmem [resolvable:$true] %s55
      %58 = dma.hbm_to_vmem [thread:$0]  %s54, 128, %s56, [#allocation7]
    $region25: #{tpu_custom_call.1} parent=1 // pred_fallthru
      _
    // Predicated region
    $region26: #{tpu_custom_call.1} parent=1 // pred_check
      _
    $region27: #{tpu_custom_call.1} parent=1 // pred_check_branch
      %60 = sbr.rel (0) target = $region29
    $region28: #{tpu_custom_call.1} parent=1 // pred_region
      _
    $region29: #{tpu_custom_call.1} parent=1 // pred_fallthru
      _
    // Predicated region
    $region30: #{tpu_custom_call.1} parent=1 // pred_check
      _
    $region31: #{tpu_custom_call.1} parent=1 // pred_check_branch
      %62 = sbr.rel (0) target = $region33
    $region32: #{tpu_custom_call.1} parent=1 // pred_region
      _
    $region33: #{tpu_custom_call.1} parent=1 // pred_fallthru
      _
    // Predicated region
    $region34: #{tpu_custom_call.1} parent=1 // pred_check
      _
    $region35: #{tpu_custom_call.1} parent=1 // pred_check_branch
      %64 = sbr.rel (0) target = $region37
    $region36: #{tpu_custom_call.1} parent=1 // pred_region
      _
    $region37: #{tpu_custom_call.1} parent=1 // pred_fallthru
      _
    // Predicated region
    $region38: #{tpu_custom_call.1} parent=1 // pred_check
      _
    $region39: #{tpu_custom_call.1} parent=1 // pred_check_branch
      %66 = sbr.rel (0) target = $region41
    $region40: #{tpu_custom_call.1} parent=1 // pred_region
      %68 = vsyncadd [#allocation10], 0
      %s69 = sshll.u32 %s9, 4
      %s70 = int_to_ptr.hbm [resolvable:$true] %s69
      %s71 = sshll.u32 [#allocation9], 4
      %s72 = int_to_ptr.vmem [resolvable:$true] %s71
      %77 = dma.hbm_to_vmem [thread:$0]  %s70, 256, %s72, [#allocation10], 128, 128, 8
    $region41: #{tpu_custom_call.1} parent=1 // pred_fallthru
      _
    // Predicated region
    $region42: #{tpu_custom_call.1} parent=1 // pred_check
      _
    $region43: #{tpu_custom_call.1} parent=1 // pred_check_branch
      %79 = sbr.rel (0) target = $region45
    $region44: #{tpu_custom_call.1} parent=1 // pred_region
      %81 = dma.done [#allocation4], 128
    $region45: #{tpu_custom_call.1} parent=1 // pred_fallthru
      _
    // Predicated region
    $region46: #{tpu_custom_call.1} parent=1 // pred_check
      _
    $region47: #{tpu_custom_call.1} parent=1 // pred_check_branch
      %83 = sbr.rel (0) target = $region49
    $region48: #{tpu_custom_call.1} parent=1 // pred_region
      %85 = dma.done [#allocation7], 128
    $region49: #{tpu_custom_call.1} parent=1 // pred_fallthru
      _
    // Predicated region
    $region50: #{tpu_custom_call.1} parent=1 // pred_check
      _
    $region51: #{tpu_custom_call.1} parent=1 // pred_check_branch
      %87 = sbr.rel (0) target = $region53
    $region52: #{tpu_custom_call.1} parent=1 // pred_region
      %89 = dma.done [#allocation7], 128
    $region53: #{tpu_custom_call.1} parent=1 // pred_fallthru
      _
    // Predicated region
    $region54: #{tpu_custom_call.1} parent=1 // pred_check
      _
    $region55: #{tpu_custom_call.1} parent=1 // pred_check_branch
      %91 = sbr.rel (0) target = $region57
    $region56: #{tpu_custom_call.1} parent=1 // pred_region
      %93 = dma.done [#allocation10], 256
    $region57: #{tpu_custom_call.1} parent=1 // pred_fallthru
      _
    %s94 = sld [smem:[#allocation2]]
    %v95 = vld [vmem:[#allocation3] sm:$0xff]
    %v96 = vld [vmem:[%s2] sm:$0xff]
    %v97 = vld [vmem:[#allocation6] sm:$0xff]
    %v98 = vld [vmem:[%s4] sm:$0xff]
    %v99 = vld [vmem:[#allocation8] sm:$0xff]
    %v100 = vld [vmem:[%s6] sm:$0xff]
    %v101 = vld [vmem:[%s7] sm:$0xff]
    %v102 = vld [vmem:[%s8] sm:$0xff]
    %v103 = vld [vmem:[#allocation9] sm:$0xff]
    %105 = vset.pattern.permute.xlu0 0
    %106 = vperm.xlu0 %105, %v96
    %v107 = vpop.permute.xlu0 %106
    %vm109 = vcmask 64512
    %v111 = vsel %vm109, %v95, 0
    %113 = vmatpush.msra.mxu0 0.0
    %114 = vmatpush.msra.mxu0 0.0
    %115 = vmatpush.msra.mxu0 0.0
    %116 = vmatpush.msra.mxu0 0.0
    %117 = vmatpush.msra.mxu0 0.0
    %118 = vmatpush.msra.mxu0 0.0
    %119 = vmatpush.msra.mxu0 0.0
    %120 = vmatpush.msra.mxu0 0.0
    %121 = vmatpush.msra.mxu0 0.0
    %122 = vmatpush.msra.mxu0 0.0
    %123 = vmatpush.msra.mxu0 0.0
    %124 = vmatpush.msra.mxu0 0.0
    %125 = vmatpush.msra.mxu0 0.0
    %126 = vmatpush.msra.mxu0 0.0
    %127 = vmatpush.msra.mxu0 0.0
    %128 = vmatpush.msra.mxu0 %v101
    %129 = vmatmul.f32.gmra.mxu0 %v111
    %v130 = vpop.f32.mrf.mxu0
    %v131 = vadd.f32 %v107, %v130
    %132 = vdwg.mxu0
    %134 = vset.pattern.permute.xlu0 0
    %135 = vperm.xlu0 %134, %v98
    %v136 = vpop.permute.xlu0 %135
    %v139 = vsel %vm109, %v97, 0
    %141 = vmatpush.msra.mxu0 0.0
    %142 = vmatpush.msra.mxu0 0.0
    %143 = vmatpush.msra.mxu0 0.0
    %144 = vmatpush.msra.mxu0 0.0
    %145 = vmatpush.msra.mxu0 0.0
    %146 = vmatpush.msra.mxu0 0.0
    %147 = vmatpush.msra.mxu0 0.0
    %148 = vmatpush.msra.mxu0 0.0
    %149 = vmatpush.msra.mxu0 0.0
    %150 = vmatpush.msra.mxu0 0.0
    %151 = vmatpush.msra.mxu0 0.0
    %152 = vmatpush.msra.mxu0 0.0
    %153 = vmatpush.msra.mxu0 0.0
    %154 = vmatpush.msra.mxu0 0.0
    %155 = vmatpush.msra.mxu0 0.0
    %156 = vmatpush.msra.mxu0 %v102
    %157 = vmatmul.f32.gmra.mxu0 %v139
    %v158 = vpop.f32.mrf.mxu0
    %v159 = vadd.f32 %v136, %v158
    %160 = vdwg.mxu0
    %162 = vset.pattern.permute.xlu0 0
    %163 = vperm.xlu0 %162, %v100
    %v164 = vpop.permute.xlu0 %163
    %v167 = vsel %vm109, %v99, 0
    %169 = vmatpush.msra.mxu0 0.0
    %170 = vmatpush.msra.mxu0 0.0
    %171 = vmatpush.msra.mxu0 0.0
    %172 = vmatpush.msra.mxu0 0.0
    %173 = vmatpush.msra.mxu0 0.0
    %174 = vmatpush.msra.mxu0 0.0
    %175 = vmatpush.msra.mxu0 0.0
    %176 = vmatpush.msra.mxu0 0.0
    %177 = vmatpush.msra.mxu0 0.0
    %178 = vmatpush.msra.mxu0 0.0
    %179 = vmatpush.msra.mxu0 0.0
    %180 = vmatpush.msra.mxu0 0.0
    %181 = vmatpush.msra.mxu0 0.0
    %182 = vmatpush.msra.mxu0 0.0
    %183 = vmatpush.msra.mxu0 0.0
    %184 = vmatpush.msra.mxu0 %v103
    %185 = vmatmul.f32.gmra.mxu0 %v167
    %v186 = vpop.f32.mrf.mxu0
    %v187 = vadd.f32 %v164, %v186
    %188 = vdwg.mxu0
    %189 = vxpose.xlu0.b32.start [1/16] %v131, 128
    %190 = vxpose.xlu0.b32.cont [2/16] 0.0, 128
    %191 = vxpose.xlu0.b32.cont [3/16] 0.0, 128
    %192 = vxpose.xlu0.b32.cont [4/16] 0.0, 128
    %193 = vxpose.xlu0.b32.cont [5/16] 0.0, 128
    %194 = vxpose.xlu0.b32.cont [6/16] 0.0, 128
    %195 = vxpose.xlu0.b32.cont [7/16] 0.0, 128
    %196 = vxpose.xlu0.b32.cont [8/16] 0.0, 128
    %197 = vxpose.xlu0.b32.cont [9/16] 0.0, 128
    %198 = vxpose.xlu0.b32.cont [10/16] 0.0, 128
    %199 = vxpose.xlu0.b32.cont [11/16] 0.0, 128
    %200 = vxpose.xlu0.b32.cont [12/16] 0.0, 128
    %201 = vxpose.xlu0.b32.cont [13/16] 0.0, 128
    %202 = vxpose.xlu0.b32.cont [14/16] 0.0, 128
    %203 = vxpose.xlu0.b32.cont [15/16] 0.0, 128
    %204 = vxpose.xlu0.b32.end [16/16] 0.0, 128
    %v205 = vpop.trf.xlu0
    %v206 = vpop.trf.xlu0
    %v207 = vpop.trf.xlu0
    %v208 = vpop.trf.xlu0
    %v209 = vpop.trf.xlu0
    %v210 = vpop.trf.xlu0
    %v211 = vpop.trf.xlu0
    %v212 = vpop.trf.xlu0
    %v213 = vpop.trf.xlu0
    %v214 = vpop.trf.xlu0
    %v215 = vpop.trf.xlu0
    %v216 = vpop.trf.xlu0
    %v217 = vpop.trf.xlu0
    %v218 = vpop.trf.xlu0
    %v219 = vpop.trf.xlu0
    %v220 = vpop.trf.xlu0
    %v222 = vsel %vm109, %v205, 0
    %v225 = vsel %vm109, %v206, 0
    %v228 = vsel %vm109, %v207, 0
    %v231 = vsel %vm109, %v208, 0
    %v234 = vsel %vm109, %v209, 0
    %v237 = vsel %vm109, %v210, 0
    %v240 = vsel %vm109, %v211, 0
    %v243 = vsel %vm109, %v212, 0
    %v246 = vsel %vm109, %v213, 0
    %v249 = vsel %vm109, %v214, 0
    %v252 = vsel %vm109, %v215, 0
    %v255 = vsel %vm109, %v216, 0
    %v258 = vsel %vm109, %v217, 0
    %v261 = vsel %vm109, %v218, 0
    %v264 = vsel %vm109, %v219, 0
    %v267 = vsel %vm109, %v220, 0
    %269 = vmatpush.msra.mxu0 0.0
    %270 = vmatpush.msra.mxu0 0.0
    %271 = vmatpush.msra.mxu0 0.0
    %272 = vmatpush.msra.mxu0 0.0
    %273 = vmatpush.msra.mxu0 0.0
    %274 = vmatpush.msra.mxu0 0.0
    %275 = vmatpush.msra.mxu0 0.0
    %276 = vmatpush.msra.mxu0 0.0
    %277 = vmatpush.msra.mxu0 0.0
    %278 = vmatpush.msra.mxu0 0.0
    %279 = vmatpush.msra.mxu0 0.0
    %280 = vmatpush.msra.mxu0 0.0
    %281 = vmatpush.msra.mxu0 0.0
    %282 = vmatpush.msra.mxu0 0.0
    %283 = vmatpush.msra.mxu0 0.0
    %284 = vmatpush.msra.mxu0 %v159
    %285 = vmatmul.f32.gmra.mxu0 %v222
    %v286 = vpop.f32.mrf.mxu0
    %v287 = vadd.f32 0.0, %v286
    %288 = vmatmul.f32.gmra.mxu0 %v225
    %v289 = vpop.f32.mrf.mxu0
    %v290 = vadd.f32 0.0, %v289
    %291 = vmatmul.f32.gmra.mxu0 %v228
    %v292 = vpop.f32.mrf.mxu0
    %v293 = vadd.f32 0.0, %v292
    %294 = vmatmul.f32.gmra.mxu0 %v231
    %v295 = vpop.f32.mrf.mxu0
    %v296 = vadd.f32 0.0, %v295
    %297 = vmatmul.f32.gmra.mxu0 %v234
    %v298 = vpop.f32.mrf.mxu0
    %v299 = vadd.f32 0.0, %v298
    %300 = vmatmul.f32.gmra.mxu0 %v237
    %v301 = vpop.f32.mrf.mxu0
    %v302 = vadd.f32 0.0, %v301
    %303 = vmatmul.f32.gmra.mxu0 %v240
    %v304 = vpop.f32.mrf.mxu0
    %v305 = vadd.f32 0.0, %v304
    %306 = vmatmul.f32.gmra.mxu0 %v243
    %v307 = vpop.f32.mrf.mxu0
    %v308 = vadd.f32 0.0, %v307
    %309 = vmatmul.f32.gmra.mxu0 %v246
    %v310 = vpop.f32.mrf.mxu0
    %v311 = vadd.f32 0.0, %v310
    %312 = vmatmul.f32.gmra.mxu0 %v249
    %v313 = vpop.f32.mrf.mxu0
    %v314 = vadd.f32 0.0, %v313
    %315 = vmatmul.f32.gmra.mxu0 %v252
    %v316 = vpop.f32.mrf.mxu0
    %v317 = vadd.f32 0.0, %v316
    %318 = vmatmul.f32.gmra.mxu0 %v255
    %v319 = vpop.f32.mrf.mxu0
    %v320 = vadd.f32 0.0, %v319
    %321 = vmatmul.f32.gmra.mxu0 %v258
    %v322 = vpop.f32.mrf.mxu0
    %v323 = vadd.f32 0.0, %v322
    %324 = vmatmul.f32.gmra.mxu0 %v261
    %v325 = vpop.f32.mrf.mxu0
    %v326 = vadd.f32 0.0, %v325
    %327 = vmatmul.f32.gmra.mxu0 %v264
    %v328 = vpop.f32.mrf.mxu0
    %v329 = vadd.f32 0.0, %v328
    %330 = vmatmul.f32.gmra.mxu0 %v267
    %v331 = vpop.f32.mrf.mxu0
    %v332 = vadd.f32 0.0, %v331
    %333 = vdwg.mxu0
    %334 = vmax.xlane.f32.xlu0 %v287
    %v335 = vpop.xlane.xlu0 %334
    %336 = vmax.xlane.f32.xlu0 %v290
    %v337 = vpop.xlane.xlu0 %336
    %338 = vmax.xlane.f32.xlu0 %v293
    %v339 = vpop.xlane.xlu0 %338
    %340 = vmax.xlane.f32.xlu0 %v296
    %v341 = vpop.xlane.xlu0 %340
    %342 = vmax.xlane.f32.xlu0 %v299
    %v343 = vpop.xlane.xlu0 %342
    %344 = vmax.xlane.f32.xlu0 %v302
    %v345 = vpop.xlane.xlu0 %344
    %346 = vmax.xlane.f32.xlu0 %v305
    %v347 = vpop.xlane.xlu0 %346
    %348 = vmax.xlane.f32.xlu0 %v308
    %v349 = vpop.xlane.xlu0 %348
    %350 = vmax.xlane.f32.xlu0 %v311
    %v351 = vpop.xlane.xlu0 %350
    %352 = vmax.xlane.f32.xlu0 %v314
    %v353 = vpop.xlane.xlu0 %352
    %354 = vmax.xlane.f32.xlu0 %v317
    %v355 = vpop.xlane.xlu0 %354
    %356 = vmax.xlane.f32.xlu0 %v320
    %v357 = vpop.xlane.xlu0 %356
    %358 = vmax.xlane.f32.xlu0 %v323
    %v359 = vpop.xlane.xlu0 %358
    %360 = vmax.xlane.f32.xlu0 %v326
    %v361 = vpop.xlane.xlu0 %360
    %362 = vmax.xlane.f32.xlu0 %v329
    %v363 = vpop.xlane.xlu0 %362
    %364 = vmax.xlane.f32.xlu0 %v332
    %v365 = vpop.xlane.xlu0 %364
    %v366 = vsub.f32 %v287, %v335
    %v367 = vsub.f32 %v290, %v337
    %v368 = vsub.f32 %v293, %v339
    %v369 = vsub.f32 %v296, %v341
    %v370 = vsub.f32 %v299, %v343
    %v371 = vsub.f32 %v302, %v345
    %v372 = vsub.f32 %v305, %v347
    %v373 = vsub.f32 %v308, %v349
    %v374 = vsub.f32 %v311, %v351
    %v375 = vsub.f32 %v314, %v353
    %v376 = vsub.f32 %v317, %v355
    %v377 = vsub.f32 %v320, %v357
    %v378 = vsub.f32 %v323, %v359
    %v379 = vsub.f32 %v326, %v361
    %v380 = vsub.f32 %v329, %v363
    %v381 = vsub.f32 %v332, %v365
    %v382 = vmul.f32 %v366, 1.442695
    %v383 = vpow.pop %v382
    %v384 = vmul.f32 %v367, 1.442695
    %v385 = vpow.pop %v384
    %v386 = vmul.f32 %v368, 1.442695
    %v387 = vpow.pop %v386
    %v388 = vmul.f32 %v369, 1.442695
    %v389 = vpow.pop %v388
    %v390 = vmul.f32 %v370, 1.442695
    %v391 = vpow.pop %v390
    %v392 = vmul.f32 %v371, 1.442695
    %v393 = vpow.pop %v392
    %v394 = vmul.f32 %v372, 1.442695
    %v395 = vpow.pop %v394
    %v396 = vmul.f32 %v373, 1.442695
    %v397 = vpow.pop %v396
    %v398 = vmul.f32 %v374, 1.442695
    %v399 = vpow.pop %v398
    %v400 = vmul.f32 %v375, 1.442695
    %v401 = vpow.pop %v400
    %v402 = vmul.f32 %v376, 1.442695
    %v403 = vpow.pop %v402
    %v404 = vmul.f32 %v377, 1.442695
    %v405 = vpow.pop %v404
    %v406 = vmul.f32 %v378, 1.442695
    %v407 = vpow.pop %v406
    %v408 = vmul.f32 %v379, 1.442695
    %v409 = vpow.pop %v408
    %v410 = vmul.f32 %v380, 1.442695
    %v411 = vpow.pop %v410
    %v412 = vmul.f32 %v381, 1.442695
    %v413 = vpow.pop %v412
    %414 = vadd.xlane.f32.xlu0 %v383
    %v415 = vpop.xlane.xlu0 %414
    %416 = vadd.xlane.f32.xlu0 %v385
    %v417 = vpop.xlane.xlu0 %416
    %418 = vadd.xlane.f32.xlu0 %v387
    %v419 = vpop.xlane.xlu0 %418
    %420 = vadd.xlane.f32.xlu0 %v389
    %v421 = vpop.xlane.xlu0 %420
    %422 = vadd.xlane.f32.xlu0 %v391
    %v423 = vpop.xlane.xlu0 %422
    %424 = vadd.xlane.f32.xlu0 %v393
    %v425 = vpop.xlane.xlu0 %424
    %426 = vadd.xlane.f32.xlu0 %v395
    %v427 = vpop.xlane.xlu0 %426
    %428 = vadd.xlane.f32.xlu0 %v397
    %v429 = vpop.xlane.xlu0 %428
    %430 = vadd.xlane.f32.xlu0 %v399
    %v431 = vpop.xlane.xlu0 %430
    %432 = vadd.xlane.f32.xlu0 %v401
    %v433 = vpop.xlane.xlu0 %432
    %434 = vadd.xlane.f32.xlu0 %v403
    %v435 = vpop.xlane.xlu0 %434
    %436 = vadd.xlane.f32.xlu0 %v405
    %v437 = vpop.xlane.xlu0 %436
    %438 = vadd.xlane.f32.xlu0 %v407
    %v439 = vpop.xlane.xlu0 %438
    %440 = vadd.xlane.f32.xlu0 %v409
    %v441 = vpop.xlane.xlu0 %440
    %442 = vadd.xlane.f32.xlu0 %v411
    %v443 = vpop.xlane.xlu0 %442
    %444 = vadd.xlane.f32.xlu0 %v413
    %v445 = vpop.xlane.xlu0 %444
    %v446 = vrcp.pop %v415
    %v447 = vrcp.pop %v417
    %v448 = vrcp.pop %v419
    %v449 = vrcp.pop %v421
    %v450 = vrcp.pop %v423
    %v451 = vrcp.pop %v425
    %v452 = vrcp.pop %v427
    %v453 = vrcp.pop %v429
    %v454 = vrcp.pop %v431
    %v455 = vrcp.pop %v433
    %v456 = vrcp.pop %v435
    %v457 = vrcp.pop %v437
    %v458 = vrcp.pop %v439
    %v459 = vrcp.pop %v441
    %v460 = vrcp.pop %v443
    %v461 = vrcp.pop %v445
    %v462 = vmul.f32 %v383, %v446
    %v463 = vmul.f32 %v385, %v447
    %v464 = vmul.f32 %v387, %v448
    %v465 = vmul.f32 %v389, %v449
    %v466 = vmul.f32 %v391, %v450
    %v467 = vmul.f32 %v393, %v451
    %v468 = vmul.f32 %v395, %v452
    %v469 = vmul.f32 %v397, %v453
    %v470 = vmul.f32 %v399, %v454
    %v471 = vmul.f32 %v401, %v455
    %v472 = vmul.f32 %v403, %v456
    %v473 = vmul.f32 %v405, %v457
    %v474 = vmul.f32 %v407, %v458
    %v475 = vmul.f32 %v409, %v459
    %v476 = vmul.f32 %v411, %v460
    %v477 = vmul.f32 %v413, %v461
    %478 = vmatpush.xpose.msra.mxu0 %v477
    %479 = vmatpush.xpose.msra.mxu0 %v476
    %480 = vmatpush.xpose.msra.mxu0 %v475
    %481 = vmatpush.xpose.msra.mxu0 %v474
    %482 = vmatpush.xpose.msra.mxu0 %v473
    %483 = vmatpush.xpose.msra.mxu0 %v472
    %484 = vmatpush.xpose.msra.mxu0 %v471
    %485 = vmatpush.xpose.msra.mxu0 %v470
    %486 = vmatpush.xpose.msra.mxu0 %v469
    %487 = vmatpush.xpose.msra.mxu0 %v468
    %488 = vmatpush.xpose.msra.mxu0 %v467
    %489 = vmatpush.xpose.msra.mxu0 %v466
    %490 = vmatpush.xpose.msra.mxu0 %v465
    %491 = vmatpush.xpose.msra.mxu0 %v464
    %492 = vmatpush.xpose.msra.mxu0 %v463
    %493 = vmatpush.xpose.msra.mxu0 %v462
    %494 = vmatmul.f32.gmra.mxu0 %v187
    %v495 = vpop.f32.mrf.mxu0
    %v496 = vadd.f32 0.0, %v495
    %497 = vdwg.mxu0
    %v498 = vstv %s94
    %v499 = vmul.f32 %v498, %v496
    %v500 = vadd.f32 %v499, %v103
    %501 = vst [vmem:[#allocation11] sm:$0xff] %v500
    %s502 = scalar_lea.vmem %s7, 8
    %v503 = vld [vmem:[%s502] sm:$0xff]
    %s504 = scalar_lea.vmem %s8, 8
    %v505 = vld [vmem:[%s504] sm:$0xff]
    %s506 = scalar_lea.vmem [#allocation9], 8
    %v507 = vld [vmem:[%s506] sm:$0xff]
    %508 = vmatpush.msra.mxu0 0.0
    %509 = vmatpush.msra.mxu0 0.0
    %510 = vmatpush.msra.mxu0 0.0
    %511 = vmatpush.msra.mxu0 0.0
    %512 = vmatpush.msra.mxu0 0.0
    %513 = vmatpush.msra.mxu0 0.0
    %514 = vmatpush.msra.mxu0 0.0
    %515 = vmatpush.msra.mxu0 0.0
    %516 = vmatpush.msra.mxu0 0.0
    %517 = vmatpush.msra.mxu0 0.0
    %518 = vmatpush.msra.mxu0 0.0
    %519 = vmatpush.msra.mxu0 0.0
    %520 = vmatpush.msra.mxu0 0.0
    %521 = vmatpush.msra.mxu0 0.0
    %522 = vmatpush.msra.mxu0 0.0
    %523 = vmatpush.msra.mxu0 %v503
    %524 = vmatmul.f32.gmra.mxu0 %v111
    %v525 = vpop.f32.mrf.mxu0
    %v526 = vadd.f32 %v107, %v525
    %527 = vdwg.mxu0
    %528 = vmatpush.msra.mxu0 0.0
    %529 = vmatpush.msra.mxu0 0.0
    %530 = vmatpush.msra.mxu0 0.0
    %531 = vmatpush.msra.mxu0 0.0
    %532 = vmatpush.msra.mxu0 0.0
    %533 = vmatpush.msra.mxu0 0.0
    %534 = vmatpush.msra.mxu0 0.0
    %535 = vmatpush.msra.mxu0 0.0
    %536 = vmatpush.msra.mxu0 0.0
    %537 = vmatpush.msra.mxu0 0.0
    %538 = vmatpush.msra.mxu0 0.0
    %539 = vmatpush.msra.mxu0 0.0
    %540 = vmatpush.msra.mxu0 0.0
    %541 = vmatpush.msra.mxu0 0.0
    %542 = vmatpush.msra.mxu0 0.0
    %543 = vmatpush.msra.mxu0 %v505
    %544 = vmatmul.f32.gmra.mxu0 %v139
    %v545 = vpop.f32.mrf.mxu0
    %v546 = vadd.f32 %v136, %v545
    %547 = vdwg.mxu0
    %548 = vmatpush.msra.mxu0 0.0
    %549 = vmatpush.msra.mxu0 0.0
    %550 = vmatpush.msra.mxu0 0.0
    %551 = vmatpush.msra.mxu0 0.0
    %552 = vmatpush.msra.mxu0 0.0
    %553 = vmatpush.msra.mxu0 0.0
    %554 = vmatpush.msra.mxu0 0.0
    %555 = vmatpush.msra.mxu0 0.0
    %556 = vmatpush.msra.mxu0 0.0
    %557 = vmatpush.msra.mxu0 0.0
    %558 = vmatpush.msra.mxu0 0.0
    %559 = vmatpush.msra.mxu0 0.0
    %560 = vmatpush.msra.mxu0 0.0
    %561 = vmatpush.msra.mxu0 0.0
    %562 = vmatpush.msra.mxu0 0.0
    %563 = vmatpush.msra.mxu0 %v507
    %564 = vmatmul.f32.gmra.mxu0 %v167
    %v565 = vpop.f32.mrf.mxu0
    %v566 = vadd.f32 %v164, %v565
    %567 = vdwg.mxu0
    %568 = vxpose.xlu0.b32.start [1/16] %v526, 128
    %569 = vxpose.xlu0.b32.cont [2/16] 0.0, 128
    %570 = vxpose.xlu0.b32.cont [3/16] 0.0, 128
    %571 = vxpose.xlu0.b32.cont [4/16] 0.0, 128
    %572 = vxpose.xlu0.b32.cont [5/16] 0.0, 128
    %573 = vxpose.xlu0.b32.cont [6/16] 0.0, 128
    %574 = vxpose.xlu0.b32.cont [7/16] 0.0, 128
    %575 = vxpose.xlu0.b32.cont [8/16] 0.0, 128
    %576 = vxpose.xlu0.b32.cont [9/16] 0.0, 128
    %577 = vxpose.xlu0.b32.cont [10/16] 0.0, 128
    %578 = vxpose.xlu0.b32.cont [11/16] 0.0, 128
    %579 = vxpose.xlu0.b32.cont [12/16] 0.0, 128
    %580 = vxpose.xlu0.b32.cont [13/16] 0.0, 128
    %581 = vxpose.xlu0.b32.cont [14/16] 0.0, 128
    %582 = vxpose.xlu0.b32.cont [15/16] 0.0, 128
    %583 = vxpose.xlu0.b32.end [16/16] 0.0, 128
    %v584 = vpop.trf.xlu0
    %v585 = vpop.trf.xlu0
    %v586 = vpop.trf.xlu0
    %v587 = vpop.trf.xlu0
    %v588 = vpop.trf.xlu0
    %v589 = vpop.trf.xlu0
    %v590 = vpop.trf.xlu0
    %v591 = vpop.trf.xlu0
    %v592 = vpop.trf.xlu0
    %v593 = vpop.trf.xlu0
    %v594 = vpop.trf.xlu0
    %v595 = vpop.trf.xlu0
    %v596 = vpop.trf.xlu0
    %v597 = vpop.trf.xlu0
    %v598 = vpop.trf.xlu0
    %v599 = vpop.trf.xlu0
    %v601 = vsel %vm109, %v584, 0
    %v604 = vsel %vm109, %v585, 0
    %v607 = vsel %vm109, %v586, 0
    %v610 = vsel %vm109, %v587, 0
    %v613 = vsel %vm109, %v588, 0
    %v616 = vsel %vm109, %v589, 0
    %v619 = vsel %vm109, %v590, 0
    %v622 = vsel %vm109, %v591, 0
    %v625 = vsel %vm109, %v592, 0
    %v628 = vsel %vm109, %v593, 0
    %v631 = vsel %vm109, %v594, 0
    %v634 = vsel %vm109, %v595, 0
    %v637 = vsel %vm109, %v596, 0
    %v640 = vsel %vm109, %v597, 0
    %v643 = vsel %vm109, %v598, 0
    %v646 = vsel %vm109, %v599, 0
    %648 = vmatpush.msra.mxu0 0.0
    %649 = vmatpush.msra.mxu0 0.0
    %650 = vmatpush.msra.mxu0 0.0
    %651 = vmatpush.msra.mxu0 0.0
    %652 = vmatpush.msra.mxu0 0.0
    %653 = vmatpush.msra.mxu0 0.0
    %654 = vmatpush.msra.mxu0 0.0
    %655 = vmatpush.msra.mxu0 0.0
    %656 = vmatpush.msra.mxu0 0.0
    %657 = vmatpush.msra.mxu0 0.0
    %658 = vmatpush.msra.mxu0 0.0
    %659 = vmatpush.msra.mxu0 0.0
    %660 = vmatpush.msra.mxu0 0.0
    %661 = vmatpush.msra.mxu0 0.0
    %662 = vmatpush.msra.mxu0 0.0
    %663 = vmatpush.msra.mxu0 %v546
    %664 = vmatmul.f32.gmra.mxu0 %v601
    %v665 = vpop.f32.mrf.mxu0
    %v666 = vadd.f32 0.0, %v665
    %667 = vmatmul.f32.gmra.mxu0 %v604
    %v668 = vpop.f32.mrf.mxu0
    %v669 = vadd.f32 0.0, %v668
    %670 = vmatmul.f32.gmra.mxu0 %v607
    %v671 = vpop.f32.mrf.mxu0
    %v672 = vadd.f32 0.0, %v671
    %673 = vmatmul.f32.gmra.mxu0 %v610
    %v674 = vpop.f32.mrf.mxu0
    %v675 = vadd.f32 0.0, %v674
    %676 = vmatmul.f32.gmra.mxu0 %v613
    %v677 = vpop.f32.mrf.mxu0
    %v678 = vadd.f32 0.0, %v677
    %679 = vmatmul.f32.gmra.mxu0 %v616
    %v680 = vpop.f32.mrf.mxu0
    %v681 = vadd.f32 0.0, %v680
    %682 = vmatmul.f32.gmra.mxu0 %v619
    %v683 = vpop.f32.mrf.mxu0
    %v684 = vadd.f32 0.0, %v683
    %685 = vmatmul.f32.gmra.mxu0 %v622
    %v686 = vpop.f32.mrf.mxu0
    %v687 = vadd.f32 0.0, %v686
    %688 = vmatmul.f32.gmra.mxu0 %v625
    %v689 = vpop.f32.mrf.mxu0
    %v690 = vadd.f32 0.0, %v689
    %691 = vmatmul.f32.gmra.mxu0 %v628
    %v692 = vpop.f32.mrf.mxu0
    %v693 = vadd.f32 0.0, %v692
    %694 = vmatmul.f32.gmra.mxu0 %v631
    %v695 = vpop.f32.mrf.mxu0
    %v696 = vadd.f32 0.0, %v695
    %697 = vmatmul.f32.gmra.mxu0 %v634
    %v698 = vpop.f32.mrf.mxu0
    %v699 = vadd.f32 0.0, %v698
    %700 = vmatmul.f32.gmra.mxu0 %v637
    %v701 = vpop.f32.mrf.mxu0
    %v702 = vadd.f32 0.0, %v701
    %703 = vmatmul.f32.gmra.mxu0 %v640
    %v704 = vpop.f32.mrf.mxu0
    %v705 = vadd.f32 0.0, %v704
    %706 = vmatmul.f32.gmra.mxu0 %v643
    %v707 = vpop.f32.mrf.mxu0
    %v708 = vadd.f32 0.0, %v707
    %709 = vmatmul.f32.gmra.mxu0 %v646
    %v710 = vpop.f32.mrf.mxu0
    %v711 = vadd.f32 0.0, %v710
    %712 = vdwg.mxu0
    %713 = vmax.xlane.f32.xlu0 %v666
    %v714 = vpop.xlane.xlu0 %713
    %715 = vmax.xlane.f32.xlu0 %v669
    %v716 = vpop.xlane.xlu0 %715
    %717 = vmax.xlane.f32.xlu0 %v672
    %v718 = vpop.xlane.xlu0 %717
    %719 = vmax.xlane.f32.xlu0 %v675
    %v720 = vpop.xlane.xlu0 %719
    %721 = vmax.xlane.f32.xlu0 %v678
    %v722 = vpop.xlane.xlu0 %721
    %723 = vmax.xlane.f32.xlu0 %v681
    %v724 = vpop.xlane.xlu0 %723
    %725 = vmax.xlane.f32.xlu0 %v684
    %v726 = vpop.xlane.xlu0 %725
    %727 = vmax.xlane.f32.xlu0 %v687
    %v728 = vpop.xlane.xlu0 %727
    %729 = vmax.xlane.f32.xlu0 %v690
    %v730 = vpop.xlane.xlu0 %729
    %731 = vmax.xlane.f32.xlu0 %v693
    %v732 = vpop.xlane.xlu0 %731
    %733 = vmax.xlane.f32.xlu0 %v696
    %v734 = vpop.xlane.xlu0 %733
    %735 = vmax.xlane.f32.xlu0 %v699
    %v736 = vpop.xlane.xlu0 %735
    %737 = vmax.xlane.f32.xlu0 %v702
    %v738 = vpop.xlane.xlu0 %737
    %739 = vmax.xlane.f32.xlu0 %v705
    %v740 = vpop.xlane.xlu0 %739
    %741 = vmax.xlane.f32.xlu0 %v708
    %v742 = vpop.xlane.xlu0 %741
    %743 = vmax.xlane.f32.xlu0 %v711
    %v744 = vpop.xlane.xlu0 %743
    %v745 = vsub.f32 %v666, %v714
    %v746 = vsub.f32 %v669, %v716
    %v747 = vsub.f32 %v672, %v718
    %v748 = vsub.f32 %v675, %v720
    %v749 = vsub.f32 %v678, %v722
    %v750 = vsub.f32 %v681, %v724
    %v751 = vsub.f32 %v684, %v726
    %v752 = vsub.f32 %v687, %v728
    %v753 = vsub.f32 %v690, %v730
    %v754 = vsub.f32 %v693, %v732
    %v755 = vsub.f32 %v696, %v734
    %v756 = vsub.f32 %v699, %v736
    %v757 = vsub.f32 %v702, %v738
    %v758 = vsub.f32 %v705, %v740
    %v759 = vsub.f32 %v708, %v742
    %v760 = vsub.f32 %v711, %v744
    %v761 = vmul.f32 %v745, 1.442695
    %v762 = vpow.pop %v761
    %v763 = vmul.f32 %v746, 1.442695
    %v764 = vpow.pop %v763
    %v765 = vmul.f32 %v747, 1.442695
    %v766 = vpow.pop %v765
    %v767 = vmul.f32 %v748, 1.442695
    %v768 = vpow.pop %v767
    %v769 = vmul.f32 %v749, 1.442695
    %v770 = vpow.pop %v769
    %v771 = vmul.f32 %v750, 1.442695
    %v772 = vpow.pop %v771
    %v773 = vmul.f32 %v751, 1.442695
    %v774 = vpow.pop %v773
    %v775 = vmul.f32 %v752, 1.442695
    %v776 = vpow.pop %v775
    %v777 = vmul.f32 %v753, 1.442695
    %v778 = vpow.pop %v777
    %v779 = vmul.f32 %v754, 1.442695
    %v780 = vpow.pop %v779
    %v781 = vmul.f32 %v755, 1.442695
    %v782 = vpow.pop %v781
    %v783 = vmul.f32 %v756, 1.442695
    %v784 = vpow.pop %v783
    %v785 = vmul.f32 %v757, 1.442695
    %v786 = vpow.pop %v785
    %v787 = vmul.f32 %v758, 1.442695
    %v788 = vpow.pop %v787
    %v789 = vmul.f32 %v759, 1.442695
    %v790 = vpow.pop %v789
    %v791 = vmul.f32 %v760, 1.442695
    %v792 = vpow.pop %v791
    %793 = vadd.xlane.f32.xlu0 %v762
    %v794 = vpop.xlane.xlu0 %793
    %795 = vadd.xlane.f32.xlu0 %v764
    %v796 = vpop.xlane.xlu0 %795
    %797 = vadd.xlane.f32.xlu0 %v766
    %v798 = vpop.xlane.xlu0 %797
    %799 = vadd.xlane.f32.xlu0 %v768
    %v800 = vpop.xlane.xlu0 %799
    %801 = vadd.xlane.f32.xlu0 %v770
    %v802 = vpop.xlane.xlu0 %801
    %803 = vadd.xlane.f32.xlu0 %v772
    %v804 = vpop.xlane.xlu0 %803
    %805 = vadd.xlane.f32.xlu0 %v774
    %v806 = vpop.xlane.xlu0 %805
    %807 = vadd.xlane.f32.xlu0 %v776
    %v808 = vpop.xlane.xlu0 %807
    %809 = vadd.xlane.f32.xlu0 %v778
    %v810 = vpop.xlane.xlu0 %809
    %811 = vadd.xlane.f32.xlu0 %v780
    %v812 = vpop.xlane.xlu0 %811
    %813 = vadd.xlane.f32.xlu0 %v782
    %v814 = vpop.xlane.xlu0 %813
    %815 = vadd.xlane.f32.xlu0 %v784
    %v816 = vpop.xlane.xlu0 %815
    %817 = vadd.xlane.f32.xlu0 %v786
    %v818 = vpop.xlane.xlu0 %817
    %819 = vadd.xlane.f32.xlu0 %v788
    %v820 = vpop.xlane.xlu0 %819
    %821 = vadd.xlane.f32.xlu0 %v790
    %v822 = vpop.xlane.xlu0 %821
    %823 = vadd.xlane.f32.xlu0 %v792
    %v824 = vpop.xlane.xlu0 %823
    %v825 = vrcp.pop %v794
    %v826 = vrcp.pop %v796
    %v827 = vrcp.pop %v798
    %v828 = vrcp.pop %v800
    %v829 = vrcp.pop %v802
    %v830 = vrcp.pop %v804
    %v831 = vrcp.pop %v806
    %v832 = vrcp.pop %v808
    %v833 = vrcp.pop %v810
    %v834 = vrcp.pop %v812
    %v835 = vrcp.pop %v814
    %v836 = vrcp.pop %v816
    %v837 = vrcp.pop %v818
    %v838 = vrcp.pop %v820
    %v839 = vrcp.pop %v822
    %v840 = vrcp.pop %v824
    %v841 = vmul.f32 %v762, %v825
    %v842 = vmul.f32 %v764, %v826
    %v843 = vmul.f32 %v766, %v827
    %v844 = vmul.f32 %v768, %v828
    %v845 = vmul.f32 %v770, %v829
    %v846 = vmul.f32 %v772, %v830
    %v847 = vmul.f32 %v774, %v831
    %v848 = vmul.f32 %v776, %v832
    %v849 = vmul.f32 %v778, %v833
    %v850 = vmul.f32 %v780, %v834
    %v851 = vmul.f32 %v782, %v835
    %v852 = vmul.f32 %v784, %v836
    %v853 = vmul.f32 %v786, %v837
    %v854 = vmul.f32 %v788, %v838
    %v855 = vmul.f32 %v790, %v839
    %v856 = vmul.f32 %v792, %v840
    %857 = vmatpush.xpose.msra.mxu0 %v856
    %858 = vmatpush.xpose.msra.mxu0 %v855
    %859 = vmatpush.xpose.msra.mxu0 %v854
    %860 = vmatpush.xpose.msra.mxu0 %v853
    %861 = vmatpush.xpose.msra.mxu0 %v852
    %862 = vmatpush.xpose.msra.mxu0 %v851
    %863 = vmatpush.xpose.msra.mxu0 %v850
    %864 = vmatpush.xpose.msra.mxu0 %v849
    %865 = vmatpush.xpose.msra.mxu0 %v848
    %866 = vmatpush.xpose.msra.mxu0 %v847
    %867 = vmatpush.xpose.msra.mxu0 %v846
    %868 = vmatpush.xpose.msra.mxu0 %v845
    %869 = vmatpush.xpose.msra.mxu0 %v844
    %870 = vmatpush.xpose.msra.mxu0 %v843
    %871 = vmatpush.xpose.msra.mxu0 %v842
    %872 = vmatpush.xpose.msra.mxu0 %v841
    %873 = vmatmul.f32.gmra.mxu0 %v566
    %v874 = vpop.f32.mrf.mxu0
    %v875 = vadd.f32 0.0, %v874
    %876 = vdwg.mxu0
    %v877 = vmul.f32 %v498, %v875
    %v878 = vadd.f32 %v877, %v507
    %s879 = scalar_lea.vmem [#allocation11], 8
    %880 = vst [vmem:[%s879] sm:$0xff] %v878
    // Predicated region
    $region58: #{tpu_custom_call.1} parent=1 // pred_check
      _
    $region59: #{tpu_custom_call.1} parent=1 // pred_check_branch
      %882 = sbr.rel (0) target = $region61
    $region60: #{tpu_custom_call.1} parent=1 // pred_region
      %884 = vsyncadd [#allocation5], 0
      %s885 = sshll.u32 [#allocation11], 4
      %s886 = int_to_ptr.vmem [resolvable:$true] %s885
      %s887 = sshll.u32 %s10, 4
      %s888 = int_to_ptr.hbm [resolvable:$true] %s887
      %893 = dma.vmem_to_hbm [thread:$0]  %s886, 256, %s888, [#allocation5], 128, 128, 8
    $region61: #{tpu_custom_call.1} parent=1 // pred_fallthru
      _
    // Predicated region
    $region62: #{tpu_custom_call.1} parent=1 // pred_check
      _
    $region63: #{tpu_custom_call.1} parent=1 // pred_check_branch
      %895 = sbr.rel (0) target = $region65
    $region64: #{tpu_custom_call.1} parent=1 // pred_region
      %897 = dma.done [#allocation5], 256
    $region65: #{tpu_custom_call.1} parent=1 // pred_fallthru
      _
    %898 = vsyncpa [#allocation4], 1
    %899 = vsyncpa [#allocation7], 1
    %900 = vsyncpa [#allocation10], 1
    %901 = vsyncpa [#allocation5], 1

</llo_original>
